<compile_context>
chip_gen: v5e
topology: v5e:2x2
jax: 0.10.0
libtpu: 0.0.40
codegen_flags: <defaults>
</compile_context>

<pallas_src>
import functools

import jax
import jax.numpy as jnp
from jax.experimental import pallas as pl
from jax.experimental.pallas import tpu as pltpu

HIDDEN_SIZE = 128


def ddpg_q_kernel(obs_ref, act_ref, w1o_ref, w1a_ref, b1_ref,
                  w2_ref, b2_ref, w3_ref, b3_ref, o_ref):
    """Fused MLP tile:
       h1 = relu(obs@W1o + act@W1a + b1)   (MXU, bf16 operands, f32 acc)
       h2 = relu(h1@W2 + b2)               (MXU, bf16 operands, f32 acc)
       q  = sum(h2 * w3_row, -1) + b3      (VPU mul + XLU lane-reduce, f32)
    """
    obs = obs_ref[...].astype(jnp.bfloat16)   # no-op if inputs already bf16
    act = act_ref[...].astype(jnp.bfloat16)

    h1 = (jnp.dot(obs, w1o_ref[...], preferred_element_type=jnp.float32)
          + jnp.dot(act, w1a_ref[...], preferred_element_type=jnp.float32)
          + b1_ref[...])
    h1 = jnp.maximum(h1, 0.0).astype(jnp.bfloat16)

    h2 = jnp.dot(h1, w2_ref[...], preferred_element_type=jnp.float32) + b2_ref[...]
    h2 = jnp.maximum(h2, 0.0)

    # Final layer: (TB,H)*(1,H) broadcast + lane reduction -> (TB,1), all f32.
    o_ref[...] = jnp.sum(h2 * w3_ref[...], axis=-1, keepdims=True) + b3_ref[...]


def pack_params(params, obs_dim):
    """One-time parameter packing (do this OUTSIDE the per-step hot path)."""
    w1, b1, w2, b2, w3, b3 = params
    return dict(
        w1o=w1[:obs_dim].astype(jnp.bfloat16),        # (obs_dim, H)
        w1a=w1[obs_dim:].astype(jnp.bfloat16),        # (act_dim, H)
        b1=b1.reshape(1, -1).astype(jnp.float32),     # (1, H)
        w2=w2.astype(jnp.bfloat16),                   # (H, H)
        b2=b2.reshape(1, -1).astype(jnp.float32),     # (1, H)
        w3=w3.reshape(1, -1).astype(jnp.float32),     # (1, H)  row vector
        b3=b3.reshape(1, 1).astype(jnp.float32),      # (1, 1)
    )


@functools.partial(jax.jit, static_argnames=("block_b",))
def ddpg_q_forward(obs, act, packed, *, block_b=1024):
    """Runs the fused kernel; returns (B, 1) Q-values (f32)."""
    B, obs_dim = obs.shape
    act_dim = act.shape[1]
    H = packed["w2"].shape[0]

    # Batch tile: multiple of 8, <= block_b, and capped at ~B/2 so the grid
    # has >= 2 programs whenever possible (keeps both v7x TCs busy).
    block_b = max(8, (block_b // 8) * 8)
    TB = min(block_b, pl.cdiv(B, 8) * 8)
    half = pl.cdiv(pl.cdiv(B, 2), 8) * 8
    if half < TB:
        TB = half
    Bp = pl.cdiv(B, TB) * TB
    if Bp != B:
        pad = Bp - B
        obs = jnp.pad(obs, ((0, pad), (0, 0)))
        act = jnp.pad(act, ((0, pad), (0, 0)))

    grid = (Bp // TB,)
    batch_spec = lambda d: pl.BlockSpec((TB, d), lambda i: (i, 0))
    resident = lambda r, c: pl.BlockSpec((r, c), lambda i: (0, 0))

    out = pl.pallas_call(
        ddpg_q_kernel,
        out_shape=jax.ShapeDtypeStruct((Bp, 1), jnp.float32),
        grid=grid,
        in_specs=[
            batch_spec(obs_dim),            # obs tile
            batch_spec(act_dim),            # act tile
            resident(obs_dim, H),           # W1 (obs rows), bf16
            resident(act_dim, H),           # W1 (act rows), bf16
            resident(1, H),                 # b1, f32
            resident(H, H),                 # W2, bf16
            resident(1, H),                 # b2, f32
            resident(1, H),                 # W3 row vector, f32
            resident(1, 1),                 # b3, f32
        ],
        out_specs=batch_spec(1),            # true-size (TB, 1) output tile
        compiler_params=pltpu.CompilerParams(
            dimension_semantics=("parallel",)),
    )(obs, act, packed["w1o"], packed["w1a"], packed["b1"],
      packed["w2"], packed["b2"], packed["w3"], packed["b3"])

    return out[:B]


def init_params(key, obs_dim, act_dim, hidden):
    """Deterministic init mimicking PyTorch nn.Linear default:
    U(-1/sqrt(fan_in), 1/sqrt(fan_in)) for both weight and bias."""
    def linear(k, fan_in, fan_out):
        kw, kb = jax.random.split(k)
        bound = 1.0 / jnp.sqrt(fan_in)
        w = jax.random.uniform(kw, (fan_in, fan_out), jnp.float32, -bound, bound)
        b = jax.random.uniform(kb, (1, fan_out), jnp.float32, -bound, bound)
        return w, b

    k1, k2, k3 = jax.random.split(key, 3)
    w1, b1 = linear(k1, obs_dim + act_dim, hidden)
    w2, b2 = linear(k2, hidden, hidden)
    w3, b3 = linear(k3, hidden, 1)
    return (w1, b1, w2, b2, w3, b3)


def reference_forward(obs, act, params):
    w1, b1, w2, b2, w3, b3 = params
    x = jnp.concatenate([obs, act], axis=-1)
    h1 = jnp.maximum(x @ w1 + b1, 0.0)
    h2 = jnp.maximum(h1 @ w2 + b2, 0.0)
    return h2 @ w3 + b3


if __name__ == "__main__":
    key = jax.random.PRNGKey(0)
    k_obs, k_act, k_params = jax.random.split(key, 3)

    obs_dim, act_dim = 24, 8
    params = init_params(k_params, obs_dim, act_dim, HIDDEN_SIZE)
    packed = pack_params(params, obs_dim)          # one-time packing

    # bf16 matmul operands (layers 1-2) -> loosened tolerance vs f32 reference.
    TOL = dict(atol=5e-2, rtol=5e-2)

    # Small batch (single-tile grid).
    batch = 8
    obs = jax.random.normal(k_obs, (batch, obs_dim), jnp.float32)
    act = jax.random.normal(k_act, (batch, act_dim), jnp.float32)
    q = jax.block_until_ready(ddpg_q_forward(obs, act, packed))
    q_ref = reference_forward(obs, act, params)
    assert q.shape == (batch, 1), q.shape
    assert jnp.allclose(q, q_ref, **TOL), "mismatch vs reference (B=8)"

    # Larger, non-multiple batch (exercises padding + multi-tile / 2-TC grid).
    batch2 = 300
    obs2 = jax.random.normal(k_obs, (batch2, obs_dim), jnp.float32)
    act2 = jax.random.normal(k_act, (batch2, act_dim), jnp.float32)
    q2 = jax.block_until_ready(ddpg_q_forward(obs2, act2, packed))
    q2_ref = reference_forward(obs2, act2, params)
    assert q2.shape == (batch2, 1), q2.shape
    assert jnp.allclose(q2, q2_ref, **TOL), "mismatch vs reference (B=300)"

    print("KERNEL_OK")
</pallas_src>

<mosaic_0001>
module attributes {stable_mosaic.version = 11 : i64} {
  func.func @ddpg_q_kernel(%arg0: i32, %arg1: memref<8x24xf32, #tpu.memory_space<vmem>>, %arg2: memref<8x8xf32, #tpu.memory_space<vmem>>, %arg3: memref<24x128xbf16, #tpu.memory_space<vmem>>, %arg4: memref<8x128xbf16, #tpu.memory_space<vmem>>, %arg5: memref<1x128xf32, #tpu.memory_space<vmem>>, %arg6: memref<128x128xbf16, #tpu.memory_space<vmem>>, %arg7: memref<1x128xf32, #tpu.memory_space<vmem>>, %arg8: memref<1x128xf32, #tpu.memory_space<vmem>>, %arg9: memref<1x1xf32, #tpu.memory_space<vmem>>, %arg10: memref<8x1xf32, #tpu.memory_space<vmem>>) attributes {dimension_semantics = [#tpu.dimension_semantics<parallel>], iteration_bounds = array<i64: 1>, scalar_prefetch = 0 : i64, scratch_operands = 0 : i64, tpu.core_type = #tpu.core_type<tc>, window_params = [{transform_indices = @transform_0, window_bounds = array<i64: 8, 24>}, {transform_indices = @transform_1, window_bounds = array<i64: 8, 8>}, {pipeline_mode = #tpu.pipeline_mode<synchronous>, transform_indices = @transform_2, window_bounds = array<i64: 24, 128>}, {pipeline_mode = #tpu.pipeline_mode<synchronous>, transform_indices = @transform_3, window_bounds = array<i64: 8, 128>}, {pipeline_mode = #tpu.pipeline_mode<synchronous>, transform_indices = @transform_4, window_bounds = array<i64: 1, 128>}, {pipeline_mode = #tpu.pipeline_mode<synchronous>, transform_indices = @transform_5, window_bounds = array<i64: 128, 128>}, {pipeline_mode = #tpu.pipeline_mode<synchronous>, transform_indices = @transform_6, window_bounds = array<i64: 1, 128>}, {pipeline_mode = #tpu.pipeline_mode<synchronous>, transform_indices = @transform_7, window_bounds = array<i64: 1, 128>}, {pipeline_mode = #tpu.pipeline_mode<synchronous>, transform_indices = @transform_8, window_bounds = array<i64: 1, 1>}, {transform_indices = @transform_9, window_bounds = array<i64: 8, 1>}]} {
    %c0 = arith.constant 0 : index
    %c0_0 = arith.constant 0 : index
    %0 = vector.load %arg1[%c0, %c0_0] : memref<8x24xf32, #tpu.memory_space<vmem>>, vector<8x24xf32>
    %1 = arith.truncf %0 : vector<8x24xf32> to vector<8x24xbf16>
    %c0_1 = arith.constant 0 : index
    %c0_2 = arith.constant 0 : index
    %2 = vector.load %arg2[%c0_1, %c0_2] : memref<8x8xf32, #tpu.memory_space<vmem>>, vector<8x8xf32>
    %3 = arith.truncf %2 : vector<8x8xf32> to vector<8x8xbf16>
    %c0_3 = arith.constant 0 : index
    %c0_4 = arith.constant 0 : index
    %4 = vector.load %arg3[%c0_3, %c0_4] : memref<24x128xbf16, #tpu.memory_space<vmem>>, vector<24x128xbf16>
    %cst = arith.constant dense<0.000000e+00> : vector<8x128xf32>
    %5 = tpu.matmul %1, %4, %cst {dimension_numbers = #tpu.dot_dimension_numbers<[1], [0], [0], [1], [0, 0, 1, 1], [], []>} : vector<8x24xbf16>, vector<24x128xbf16>, vector<8x128xf32> -> vector<8x128xf32>
    %c0_5 = arith.constant 0 : index
    %c0_6 = arith.constant 0 : index
    %6 = vector.load %arg4[%c0_5, %c0_6] : memref<8x128xbf16, #tpu.memory_space<vmem>>, vector<8x128xbf16>
    %cst_7 = arith.constant dense<0.000000e+00> : vector<8x128xf32>
    %7 = tpu.matmul %3, %6, %cst_7 {dimension_numbers = #tpu.dot_dimension_numbers<[1], [0], [0], [1], [0, 0, 1, 1], [], []>} : vector<8x8xbf16>, vector<8x128xbf16>, vector<8x128xf32> -> vector<8x128xf32>
    %8 = arith.addf %5, %7 : vector<8x128xf32>
    %c0_8 = arith.constant 0 : index
    %c0_9 = arith.constant 0 : index
    %9 = vector.load %arg5[%c0_8, %c0_9] : memref<1x128xf32, #tpu.memory_space<vmem>>, vector<1x128xf32>
    %10 = vector.broadcast %9 : vector<1x128xf32> to vector<8x128xf32>
    %11 = arith.addf %8, %10 : vector<8x128xf32>
    %cst_10 = arith.constant 0.000000e+00 : f32
    %12 = vector.broadcast %cst_10 : f32 to vector<8x128xf32>
    %13 = arith.maximumf %11, %12 : vector<8x128xf32>
    %14 = arith.truncf %13 : vector<8x128xf32> to vector<8x128xbf16>
    %c0_11 = arith.constant 0 : index
    %c0_12 = arith.constant 0 : index
    %15 = vector.load %arg6[%c0_11, %c0_12] : memref<128x128xbf16, #tpu.memory_space<vmem>>, vector<128x128xbf16>
    %cst_13 = arith.constant dense<0.000000e+00> : vector<8x128xf32>
    %16 = tpu.matmul %14, %15, %cst_13 {dimension_numbers = #tpu.dot_dimension_numbers<[1], [0], [0], [1], [0, 0, 1, 1], [], []>} : vector<8x128xbf16>, vector<128x128xbf16>, vector<8x128xf32> -> vector<8x128xf32>
    %c0_14 = arith.constant 0 : index
    %c0_15 = arith.constant 0 : index
    %17 = vector.load %arg7[%c0_14, %c0_15] : memref<1x128xf32, #tpu.memory_space<vmem>>, vector<1x128xf32>
    %18 = vector.broadcast %17 : vector<1x128xf32> to vector<8x128xf32>
    %19 = arith.addf %16, %18 : vector<8x128xf32>
    %cst_16 = arith.constant 0.000000e+00 : f32
    %20 = vector.broadcast %cst_16 : f32 to vector<8x128xf32>
    %21 = arith.maximumf %19, %20 : vector<8x128xf32>
    %c0_17 = arith.constant 0 : index
    %c0_18 = arith.constant 0 : index
    %22 = vector.load %arg8[%c0_17, %c0_18] : memref<1x128xf32, #tpu.memory_space<vmem>>, vector<1x128xf32>
    %23 = vector.broadcast %22 : vector<1x128xf32> to vector<8x128xf32>
    %24 = arith.mulf %21, %23 : vector<8x128xf32>
    %cst_19 = arith.constant dense<0.000000e+00> : vector<8xf32>
    %25 = vector.multi_reduction <add>, %24, %cst_19 [1] : vector<8x128xf32> to vector<8xf32>
    %26 = vector.shape_cast %25 : vector<8xf32> to vector<8x1xf32>
    %c0_20 = arith.constant 0 : index
    %c0_21 = arith.constant 0 : index
    %27 = vector.load %arg9[%c0_20, %c0_21] : memref<1x1xf32, #tpu.memory_space<vmem>>, vector<1x1xf32>
    %28 = vector.broadcast %27 : vector<1x1xf32> to vector<8x1xf32>
    %29 = arith.addf %26, %28 : vector<8x1xf32>
    %c0_22 = arith.constant 0 : index
    %c0_23 = arith.constant 0 : index
    %30 = vector.load %arg10[%c0_22, %c0_23] : memref<8x1xf32, #tpu.memory_space<vmem>>, vector<8x1xf32>
    tpu.vector_store %arg10[%c0_22, %c0_23], %29 {strides = array<i32>} : memref<8x1xf32, #tpu.memory_space<vmem>>, vector<8x1xf32>,
    return
  }
  func.func @transform_0(%arg0: i32) -> (i32, i32) {
    %c0_i32 = arith.constant 0 : i32
    %c0_i32_0 = arith.constant 0 : i32
    return %arg0, %c0_i32 : i32, i32
  }
  func.func @transform_1(%arg0: i32) -> (i32, i32) {
    %c0_i32 = arith.constant 0 : i32
    %c0_i32_0 = arith.constant 0 : i32
    return %arg0, %c0_i32 : i32, i32
  }
  func.func @transform_2(%arg0: i32) -> (i32, i32) {
    %c0_i32 = arith.constant 0 : i32
    %c0_i32_0 = arith.constant 0 : i32
    %c0_i32_1 = arith.constant 0 : i32
    return %c0_i32, %c0_i32_0 : i32, i32
  }
  func.func @transform_3(%arg0: i32) -> (i32, i32) {
    %c0_i32 = arith.constant 0 : i32
    %c0_i32_0 = arith.constant 0 : i32
    %c0_i32_1 = arith.constant 0 : i32
    return %c0_i32, %c0_i32_0 : i32, i32
  }
  func.func @transform_4(%arg0: i32) -> (i32, i32) {
    %c0_i32 = arith.constant 0 : i32
    %c0_i32_0 = arith.constant 0 : i32
    %c0_i32_1 = arith.constant 0 : i32
    return %c0_i32, %c0_i32_0 : i32, i32
  }
  func.func @transform_5(%arg0: i32) -> (i32, i32) {
    %c0_i32 = arith.constant 0 : i32
    %c0_i32_0 = arith.constant 0 : i32
    %c0_i32_1 = arith.constant 0 : i32
    return %c0_i32, %c0_i32_0 : i32, i32
  }
  func.func @transform_6(%arg0: i32) -> (i32, i32) {
    %c0_i32 = arith.constant 0 : i32
    %c0_i32_0 = arith.constant 0 : i32
    %c0_i32_1 = arith.constant 0 : i32
    return %c0_i32, %c0_i32_0 : i32, i32
  }
  func.func @transform_7(%arg0: i32) -> (i32, i32) {
    %c0_i32 = arith.constant 0 : i32
    %c0_i32_0 = arith.constant 0 : i32
    %c0_i32_1 = arith.constant 0 : i32
    return %c0_i32, %c0_i32_0 : i32, i32
  }
  func.func @transform_8(%arg0: i32) -> (i32, i32) {
    %c0_i32 = arith.constant 0 : i32
    %c0_i32_0 = arith.constant 0 : i32
    %c0_i32_1 = arith.constant 0 : i32
    return %c0_i32, %c0_i32_0 : i32, i32
  }
  func.func @transform_9(%arg0: i32) -> (i32, i32) {
    %c0_i32 = arith.constant 0 : i32
    %c0_i32_0 = arith.constant 0 : i32
    return %arg0, %c0_i32 : i32, i32
  }
}

</mosaic_0001>

<llo_original>
// kernel: ddpg_q_forward.1
$region0: #{ddpg_q_forward.1}
  #allocation0 [shape = 'u32[]', space=smem, size = 0x4, offset = 0x4, fixed_abs, tag = 'smem constant byte address 0x4 - core index']
  #allocation1 [shape = 'u32[72,128]{1,0:T(1,128)}', space=vmem, size = 0x9000, scoped, tag = 'internal scratch']
  #allocation2 [shape = 'f32[1,1]{1,0:T(1,128)S(1)}', space=vmem, size = 0x200, scoped, tag = 'scoped memory for ddpg_q_forward.1']
  %s0 = inlined_call_operand.hbm [shape: f32[8,24], index: 0, kind: input, shape index: {}]
  %s1 = inlined_call_operand.hbm [shape: f32[8,8], index: 1, kind: input, shape index: {}]
  %s2 = inlined_call_operand.hbm [shape: bf16[24,128], index: 2, kind: input, shape index: {}]
  %s3 = inlined_call_operand.vmem [shape: bf16[8,128], index: 3, kind: input, shape index: {}]
  %s4 = inlined_call_operand.vmem [shape: f32[1,128], index: 4, kind: input, shape index: {}]
  %s5 = inlined_call_operand.hbm [shape: bf16[128,128], index: 5, kind: input, shape index: {}]
  %s6 = inlined_call_operand.hbm [shape: f32[1,128], index: 6, kind: input, shape index: {}]
  %s7 = inlined_call_operand.vmem [shape: f32[1,128], index: 7, kind: input, shape index: {}]
  %s8 = inlined_call_operand.<no memory space> [shape: f32[1,1], index: 8, kind: input, shape index: {}]
  %s9 = inlined_call_operand.vmem [shape: f32[8,1], index: 9, kind: output, shape index: {}]
  %s10 = sld [smem:[#allocation0]]
  $region66: #{ddpg_q_forward.1} parent=0
    _
  %s12 = ssub.s32 1, %s10
  %s13 = scalar_select 0, %s12, %s10
  %v14 = vstv %s8
  %15 = vst [vmem:[#allocation2] sm:$0x1] %v14
  $region1: #{ddpg_q_forward.1} parent=0
    #allocation3 [shape = 'u8[4096]{0}', space=vmem, size = 0x1000, scoped, tag = 'input window, operand 0, single buffered']
    #allocation4 [shape = 's32[1]{0}', space=sflag, size = 0x4, scoped, tag = 'scoped memory for ddpg_q_forward.1']
    #allocation5 [shape = 'u8[4096]{0}', space=vmem, size = 0x1000, scoped, tag = 'input window, operand 1, single buffered']
    #allocation6 [shape = 's32[1]{0}', space=sflag, size = 0x4, scoped, tag = 'scoped memory for ddpg_q_forward.1']
    #allocation7 [shape = 'u8[6144]{0}', space=vmem, size = 0x1800, scoped, tag = 'input window, operand 2, single buffered']
    #allocation8 [shape = 'u8[32768]{0}', space=vmem, size = 0x8000, scoped, tag = 'input window, operand 5, single buffered']
    #allocation9 [shape = 's32[1]{0}', space=sflag, size = 0x4, scoped, tag = 'scoped memory for ddpg_q_forward.1']
    #allocation10 [shape = 'u8[512]{0}', space=vmem, size = 0x400, scoped, tag = 'input window, operand 6, single buffered']
    %16 = vsyncpa [#allocation4], 0
    %17 = vsyncpa [#allocation6], 0
    %18 = vsyncpa [#allocation9], 0
    // Predicated region
    $region2: #{ddpg_q_forward.1} parent=1 // pred_check
      _
    $region3: #{ddpg_q_forward.1} parent=1 // pred_check_branch
      %20 = sbr.rel (0) target = $region5
    $region4: #{ddpg_q_forward.1} parent=1 // pred_region
      %22 = vsyncadd [#allocation4], 0
      %s24 = sshll.u32 %s0, 4
      %s25 = int_to_ptr.hbm [resolvable:$true] %s24
      %s26 = sshll.u32 [#allocation3], 4
      %s27 = int_to_ptr.vmem [resolvable:$true] %s26
      %29 = dma.hbm_to_vmem [thread:$0]  %s25, 128, %s27, [#allocation4]
    $region5: #{ddpg_q_forward.1} parent=1 // pred_fallthru
      _
    // Predicated region
    $region6: #{ddpg_q_forward.1} parent=1 // pred_check
      _
    $region7: #{ddpg_q_forward.1} parent=1 // pred_check_branch
      %31 = sbr.rel (0) target = $region9
    $region8: #{ddpg_q_forward.1} parent=1 // pred_region
      %33 = vsyncadd [#allocation6], 0
      %s35 = sshll.u32 %s1, 4
      %s36 = int_to_ptr.hbm [resolvable:$true] %s35
      %s37 = sshll.u32 [#allocation5], 4
      %s38 = int_to_ptr.vmem [resolvable:$true] %s37
      %40 = dma.hbm_to_vmem [thread:$0]  %s36, 128, %s38, [#allocation6]
    $region9: #{ddpg_q_forward.1} parent=1 // pred_fallthru
      _
    // Predicated region
    $region10: #{ddpg_q_forward.1} parent=1 // pred_check
      _
    $region11: #{ddpg_q_forward.1} parent=1 // pred_check_branch
      %42 = sbr.rel (0) target = $region13
    $region12: #{ddpg_q_forward.1} parent=1 // pred_region
      %44 = vsyncadd [#allocation6], 0
      %s45 = sshll.u32 %s2, 4
      %s46 = int_to_ptr.hbm [resolvable:$true] %s45
      %s47 = sshll.u32 [#allocation7], 4
      %s48 = int_to_ptr.vmem [resolvable:$true] %s47
      %53 = dma.hbm_to_vmem [thread:$0]  %s46, 192, %s48, [#allocation6], 64, 64, 4
    $region13: #{ddpg_q_forward.1} parent=1 // pred_fallthru
      _
    // Predicated region
    $region14: #{ddpg_q_forward.1} parent=1 // pred_check
      _
    $region15: #{ddpg_q_forward.1} parent=1 // pred_check_branch
      %55 = sbr.rel (0) target = $region17
    $region16: #{ddpg_q_forward.1} parent=1 // pred_region
      _
    $region17: #{ddpg_q_forward.1} parent=1 // pred_fallthru
      _
    // Predicated region
    $region18: #{ddpg_q_forward.1} parent=1 // pred_check
      _
    $region19: #{ddpg_q_forward.1} parent=1 // pred_check_branch
      %57 = sbr.rel (0) target = $region21
    $region20: #{ddpg_q_forward.1} parent=1 // pred_region
      _
    $region21: #{ddpg_q_forward.1} parent=1 // pred_fallthru
      _
    // Predicated region
    $region22: #{ddpg_q_forward.1} parent=1 // pred_check
      _
    $region23: #{ddpg_q_forward.1} parent=1 // pred_check_branch
      %59 = sbr.rel (0) target = $region25
    $region24: #{ddpg_q_forward.1} parent=1 // pred_region
      %61 = vsyncadd [#allocation9], 0
      %s62 = sshll.u32 %s5, 4
      %s63 = int_to_ptr.hbm [resolvable:$true] %s62
      %s64 = sshll.u32 [#allocation8], 4
      %s65 = int_to_ptr.vmem [resolvable:$true] %s64
      %70 = dma.hbm_to_vmem [thread:$0]  %s63, 1024, %s65, [#allocation9], 64, 64, 4
    $region25: #{ddpg_q_forward.1} parent=1 // pred_fallthru
      _
    // Predicated region
    $region26: #{ddpg_q_forward.1} parent=1 // pred_check
      _
    $region27: #{ddpg_q_forward.1} parent=1 // pred_check_branch
      %72 = sbr.rel (0) target = $region29
    $region28: #{ddpg_q_forward.1} parent=1 // pred_region
      %74 = vsyncadd [#allocation9], 0
      %s76 = sshll.u32 %s6, 4
      %s77 = int_to_ptr.hbm [resolvable:$true] %s76
      %s78 = sshll.u32 [#allocation10], 4
      %s79 = int_to_ptr.vmem [resolvable:$true] %s78
      %81 = dma.hbm_to_vmem [thread:$0]  %s77, 16, %s79, [#allocation9]
    $region29: #{ddpg_q_forward.1} parent=1 // pred_fallthru
      _
    // Predicated region
    $region30: #{ddpg_q_forward.1} parent=1 // pred_check
      _
    $region31: #{ddpg_q_forward.1} parent=1 // pred_check_branch
      %83 = sbr.rel (0) target = $region33
    $region32: #{ddpg_q_forward.1} parent=1 // pred_region
      _
    $region33: #{ddpg_q_forward.1} parent=1 // pred_fallthru
      _
    // Predicated region
    $region34: #{ddpg_q_forward.1} parent=1 // pred_check
      _
    $region35: #{ddpg_q_forward.1} parent=1 // pred_check_branch
      %85 = sbr.rel (0) target = $region37
    $region36: #{ddpg_q_forward.1} parent=1 // pred_region
      _
    $region37: #{ddpg_q_forward.1} parent=1 // pred_fallthru
      _
    // Predicated region
    $region38: #{ddpg_q_forward.1} parent=1 // pred_check
      _
    $region39: #{ddpg_q_forward.1} parent=1 // pred_check_branch
      %87 = sbr.rel (0) target = $region41
    $region40: #{ddpg_q_forward.1} parent=1 // pred_region
      %89 = dma.done [#allocation4], 128
    $region41: #{ddpg_q_forward.1} parent=1 // pred_fallthru
      _
    // Predicated region
    $region42: #{ddpg_q_forward.1} parent=1 // pred_check
      _
    $region43: #{ddpg_q_forward.1} parent=1 // pred_check_branch
      %91 = sbr.rel (0) target = $region45
    $region44: #{ddpg_q_forward.1} parent=1 // pred_region
      %93 = dma.done [#allocation6], 128
    $region45: #{ddpg_q_forward.1} parent=1 // pred_fallthru
      _
    // Predicated region
    $region46: #{ddpg_q_forward.1} parent=1 // pred_check
      _
    $region47: #{ddpg_q_forward.1} parent=1 // pred_check_branch
      %95 = sbr.rel (0) target = $region49
    $region48: #{ddpg_q_forward.1} parent=1 // pred_region
      %97 = dma.done [#allocation6], 192
    $region49: #{ddpg_q_forward.1} parent=1 // pred_fallthru
      _
    // Predicated region
    $region50: #{ddpg_q_forward.1} parent=1 // pred_check
      _
    $region51: #{ddpg_q_forward.1} parent=1 // pred_check_branch
      %99 = sbr.rel (0) target = $region53
    $region52: #{ddpg_q_forward.1} parent=1 // pred_region
      %101 = dma.done [#allocation9], 1024
    $region53: #{ddpg_q_forward.1} parent=1 // pred_fallthru
      _
    // Predicated region
    $region54: #{ddpg_q_forward.1} parent=1 // pred_check
      _
    $region55: #{ddpg_q_forward.1} parent=1 // pred_check_branch
      %103 = sbr.rel (0) target = $region57
    $region56: #{ddpg_q_forward.1} parent=1 // pred_region
      %105 = dma.done [#allocation9], 16
    $region57: #{ddpg_q_forward.1} parent=1 // pred_fallthru
      _
    %v107 = vld [vmem:[#allocation3] sm:$0xff]
    %v108 = vpack.c.bf16 %v107, %v107
    %v109 = vld [vmem:[#allocation5] sm:$0xff]
    %v110 = vpack.c.bf16 %v109, %v109
    %v111 = vld [vmem:[#allocation7] sm:$0xf]
    %v112 = vld [vmem:[#allocation7 + $0x4] sm:$0xf]
    %v113 = vld [vmem:[#allocation7 + $0x8] sm:$0xf]
    %v114 = vld [vmem:[%s3] sm:$0xf]
    %vm115 = vcmask 64512
    %v117 = vsel %vm115, %v110, 0
    %vm119 = vcmask 1043456
    %v121 = vsel %vm119, %v114, 0
    %123 = vmatpush.bf16.msra.mxu0 0
    %124 = vmatpush.bf16.msra.mxu0 0
    %125 = vmatpush.bf16.msra.mxu0 0
    %126 = vmatpush.bf16.msra.mxu0 0
    %127 = vmatpush.bf16.msra.mxu0 0
    %128 = vmatpush.bf16.msra.mxu0 0
    %129 = vmatpush.bf16.msra.mxu0 0
    %130 = vmatpush.bf16.msra.mxu0 %v121
    %131 = vmatmul.bf16.gmra.mxu0 %v117
    %v132 = vpop.f32.mrf.mxu0
    %v133 = vadd.f32 0.0, %v132
    %v134 = vpop.f32.mrf.mxu0
    %135 = vdwg.mxu0
    %v139 = vunpack.c.l.b16 %v111
    %v140 = vunpack.c.l.b16 %v112
    %v141 = vunpack.c.l.b16 %v113
    %v142 = vpack.c.b16 %v140, %v139
    %v143 = vpack.c.b16 %v141, %v141
    %vm145 = vcmask 195584
    %v147 = vsel %vm145, %v108, 0
    %v150 = vsel %vm119, %v143, 0
    %152 = vmatpush.bf16.msra.mxu0 0
    %153 = vmatpush.bf16.msra.mxu0 0
    %154 = vmatpush.bf16.msra.mxu0 0
    %155 = vmatpush.bf16.msra.mxu0 0
    %156 = vmatpush.bf16.msra.mxu0 0
    %157 = vmatpush.bf16.msra.mxu0 0
    %158 = vmatpush.bf16.msra.mxu0 %v150
    %159 = vmatpush.bf16.msra.mxu0 %v142
    %160 = vmatmul.bf16.gmra.mxu0 %v147
    %v161 = vpop.f32.mrf.mxu0
    %v162 = vadd.f32 %v133, %v161
    %v163 = vpop.f32.mrf.mxu0
    %164 = vdwg.mxu0
    %v165 = vld [vmem:[%s4] sm:$0x1]
    %v167 = vperm.slane %v165, 0
    %v169 = vadd.f32 %v162, %v167
    %v170 = vmax.f32 %v169, 0.0
    %v171 = vpack.c.bf16 %v170, %v170
    %v172 = vld [vmem:[#allocation8] sm:$0xf]
    %v173 = vld [vmem:[#allocation8 + $0x4] sm:$0xf]
    %v174 = vld [vmem:[#allocation8 + $0x8] sm:$0xf]
    %v175 = vld [vmem:[#allocation8 + $0xc] sm:$0xf]
    %v176 = vld [vmem:[#allocation8 + $0x10] sm:$0xf]
    %v177 = vld [vmem:[#allocation8 + $0x14] sm:$0xf]
    %v178 = vld [vmem:[#allocation8 + $0x18] sm:$0xf]
    %v179 = vld [vmem:[#allocation8 + $0x1c] sm:$0xf]
    %v180 = vld [vmem:[#allocation8 + $0x20] sm:$0xf]
    %v181 = vld [vmem:[#allocation8 + $0x24] sm:$0xf]
    %v182 = vld [vmem:[#allocation8 + $0x28] sm:$0xf]
    %v183 = vld [vmem:[#allocation8 + $0x2c] sm:$0xf]
    %v184 = vld [vmem:[#allocation8 + $0x30] sm:$0xf]
    %v185 = vld [vmem:[#allocation8 + $0x34] sm:$0xf]
    %v186 = vld [vmem:[#allocation8 + $0x38] sm:$0xf]
    %v187 = vld [vmem:[#allocation8 + $0x3c] sm:$0xf]
    %v188 = vld [vmem:[#allocation10] sm:$0x1]
    %v190 = vperm.slane %v188, 0
    %v208 = vunpack.c.l.b16 %v172
    %v209 = vunpack.c.l.b16 %v173
    %v210 = vunpack.c.l.b16 %v174
    %v211 = vunpack.c.l.b16 %v175
    %v212 = vunpack.c.l.b16 %v176
    %v213 = vunpack.c.l.b16 %v177
    %v214 = vunpack.c.l.b16 %v178
    %v215 = vunpack.c.l.b16 %v179
    %v216 = vunpack.c.l.b16 %v180
    %v217 = vunpack.c.l.b16 %v181
    %v218 = vunpack.c.l.b16 %v182
    %v219 = vunpack.c.l.b16 %v183
    %v220 = vunpack.c.l.b16 %v184
    %v221 = vunpack.c.l.b16 %v185
    %v222 = vunpack.c.l.b16 %v186
    %v223 = vunpack.c.l.b16 %v187
    %v224 = vpack.c.b16 %v209, %v208
    %v225 = vpack.c.b16 %v211, %v210
    %v226 = vpack.c.b16 %v213, %v212
    %v227 = vpack.c.b16 %v215, %v214
    %v228 = vpack.c.b16 %v217, %v216
    %v229 = vpack.c.b16 %v219, %v218
    %v230 = vpack.c.b16 %v221, %v220
    %v231 = vpack.c.b16 %v223, %v222
    %240 = vmatpush.bf16.msra.mxu0 %v231
    %241 = vmatpush.bf16.msra.mxu0 %v230
    %242 = vmatpush.bf16.msra.mxu0 %v229
    %243 = vmatpush.bf16.msra.mxu0 %v228
    %244 = vmatpush.bf16.msra.mxu0 %v227
    %245 = vmatpush.bf16.msra.mxu0 %v226
    %246 = vmatpush.bf16.msra.mxu0 %v225
    %247 = vmatpush.bf16.msra.mxu0 %v224
    %248 = vmatmul.bf16.gmra.mxu0 %v171
    %v249 = vpop.f32.mrf.mxu0
    %v250 = vadd.f32 %v190, %v249
    %v251 = vpop.f32.mrf.mxu0
    %252 = vdwg.mxu0
    %v253 = vmax.f32 %v250, 0.0
    %v254 = vld [vmem:[%s7] sm:$0x1]
    %v256 = vperm.slane %v254, 0
    %v258 = vmul.f32 %v253, %v256
    %259 = vadd.xlane.f32.xlu0 %v258
    %v260 = vpop.xlane.xlu0 %259
    %v261 = vld [vmem:[#allocation2] sm:$0x1]
    %v263 = vperm.slane %v261, 0
    %v265 = vadd.f32 %v260, %v263
    %vm266 = vcmask 7168
    %267 = vst.msk [vmem:[%s9] sm:$0xff] %vm266, %v265
    // Predicated region
    $region58: #{ddpg_q_forward.1} parent=1 // pred_check
      _
    $region59: #{ddpg_q_forward.1} parent=1 // pred_check_branch
      %269 = sbr.rel (0) target = $region61
    $region60: #{ddpg_q_forward.1} parent=1 // pred_region
      _
    $region61: #{ddpg_q_forward.1} parent=1 // pred_fallthru
      _
    // Predicated region
    $region62: #{ddpg_q_forward.1} parent=1 // pred_check
      _
    $region63: #{ddpg_q_forward.1} parent=1 // pred_check_branch
      %271 = sbr.rel (0) target = $region65
    $region64: #{ddpg_q_forward.1} parent=1 // pred_region
      _
    $region65: #{ddpg_q_forward.1} parent=1 // pred_fallthru
      _
    %272 = vsyncpa [#allocation4], 1
    %273 = vsyncpa [#allocation6], 1
    %274 = vsyncpa [#allocation9], 1

</llo_original>
